<compile_context>
chip_gen: v6e
topology: v6e:2x2x1
jax: 0.10.0
libtpu: 0.0.40
codegen_flags: <defaults>
</compile_context>

<pallas_src>
import functools

import jax
import jax.numpy as jnp
from jax.experimental import pallas as pl
from jax.experimental.pallas import tpu as pltpu

# Arrays at or below this size run as one block (per-call overhead dominates
# anyway); anything larger is split into >= 2 blocks so the pipeline overlaps.
_SINGLE_BLOCK_MAX_BYTES = 1 << 20  # 1 MiB


def _cdiv(a, b):
    return -(-a // b)


def _default_target_tile_bytes():
    """Per-operand VMEM tile target, chosen per TPU generation."""
    try:
        kind = jax.devices()[0].device_kind.lower()
    except Exception:  # backend not initialised / non-TPU — safe default
        return 2 * 1024 * 1024
    if "v7" in kind:
        return 4 * 1024 * 1024          # 3 ops x 2 bufs = 24 MiB < 32 MiB scoped
    if "v5 lite" in kind or "v5lite" in kind or "v5e" in kind:
        return 3 * 512 * 1024           # 1.5 MiB: stay well under 16 MiB scoped
    return 2 * 1024 * 1024              # v6e & friends: already ~roofline here


_TARGET_TILE_BYTES = _default_target_tile_bytes()


def _ema_kernel(x_ref, shadow_ref, out_ref, *, mu):
    # Pure VPU elementwise op.  HBM traffic stays in each operand's own dtype;
    # arithmetic runs in f32 (v5e has no bf16 VALU; cost is hidden under DMA).
    x = x_ref[...].astype(jnp.float32)
    s = shadow_ref[...].astype(jnp.float32)
    out_ref[...] = ((1.0 - mu) * x + mu * s).astype(out_ref.dtype)


def _choose_tiling(shape, itemsize, target_bytes):
    """Greedy, copy-free tiling of the ORIGINAL shape.

    Returns (block_shape, grid, index_map).  Leading axes are split first
    (no alignment constraint), then the second-to-last axis (multiples of 8)
    and the last axis (multiples of 128), until a block is ~target_bytes per
    operand.  Blocks whose trailing dims equal the full array dims are always
    legal, so odd shapes never need padding.
    """
    ndim = len(shape)
    block = list(shape)

    def nbytes(b):
        n = itemsize
        for v in b:
            n *= v
        return n

    grid_axes, grid = [], []
    if nbytes(block) > _SINGLE_BLOCK_MAX_BYTES:
        for ax in range(ndim):
            if nbytes(block) <= target_bytes:
                break
            d = shape[ax]
            align = 128 if ax == ndim - 1 else (8 if ax == ndim - 2 else 1)
            if d < 2 * align:
                continue  # cannot form >= 2 aligned blocks along this axis
            # Blocks needed to reach ~target_bytes; prefer an even count so the
            # grid splits evenly across v7x's two TensorCores.
            nblk = max(2, _cdiv(nbytes(block), target_bytes))
            if nblk > 2 and nblk % 2:
                nblk += 1
            tile = max(align, _cdiv(_cdiv(d, nblk), align) * align)
            nblk = _cdiv(d, tile)  # ragged last block is handled by Pallas
            if nblk < 2:
                continue
            block[ax] = tile
            grid_axes.append(ax)
            grid.append(nblk)

    if not grid:
        grid = [1]
        index_map = lambda i: (0,) * ndim
    else:
        pos = {ax: g for g, ax in enumerate(grid_axes)}

        def index_map(*gidx):
            return tuple(gidx[pos[ax]] if ax in pos else 0 for ax in range(ndim))

    return tuple(block), tuple(grid), index_map


@functools.partial(jax.jit, static_argnames=("mu",), donate_argnums=(1,))
def ema_update(x, shadow, *, mu):
    """new = (1 - mu) * x + mu * shadow, elementwise, via a Pallas TPU kernel.

    `shadow` is donated; its HBM buffer is reused for the output whenever the
    promoted result dtype matches the shadow dtype (the common case).
    """
    assert x.shape == shadow.shape, (x.shape, shadow.shape)
    orig_shape = x.shape
    out_dtype = jnp.promote_types(x.dtype, shadow.dtype)

    # 0-/1-D tensors (biases, scalars): prepend singleton dims so the kernel
    # always sees a 2-D ref.  Adding leading size-1 major dims is layout-free
    # (and these tensors are tiny).  ndim >= 2 tensors pass through completely
    # untouched: no reshape, no pad, no relayout copies.
    if x.ndim < 2:
        view_shape = (1,) * (2 - x.ndim) + orig_shape
        x = x.reshape(view_shape)
        shadow = shadow.reshape(view_shape)

    itemsize = max(jnp.dtype(x.dtype).itemsize,
                   jnp.dtype(shadow.dtype).itemsize,
                   jnp.dtype(out_dtype).itemsize)
    block, grid, index_map = _choose_tiling(x.shape, itemsize, _TARGET_TILE_BYTES)
    spec = pl.BlockSpec(block, index_map)

    # Write the new average straight into the donated shadow HBM buffer.
    aliases = {1: 0} if out_dtype == shadow.dtype else {}

    out = pl.pallas_call(
        functools.partial(_ema_kernel, mu=float(mu)),
        out_shape=jax.ShapeDtypeStruct(x.shape, out_dtype),
        grid_spec=pltpu.PrefetchScalarGridSpec(
            num_scalar_prefetch=0,
            grid=grid,
            in_specs=[spec, spec],
            out_specs=spec,
        ),
        input_output_aliases=aliases,
        compiler_params=pltpu.CompilerParams(
            dimension_semantics=("parallel",) * len(grid),
        ),
    )(x, shadow)

    if out.shape != orig_shape:
        out = out.reshape(orig_shape)
    return out


class EMA:
    """JAX/Pallas port of the PyTorch EMA module (forward = EMA update)."""

    def __init__(self, mu=0.999):
        self.mu = mu
        self.shadow = {}

    def register(self, name, val):
        # clone() equivalent: independent buffer, so donating the shadow
        # inside ema_update never invalidates the caller's array.
        self.shadow[name] = jnp.array(val, copy=True)

    def __call__(self, name, x):
        assert name in self.shadow
        new_average = ema_update(jnp.asarray(x), self.shadow[name], mu=self.mu)
        self.shadow[name] = new_average
        return new_average

    forward = __call__


if __name__ == "__main__":
    key = jax.random.PRNGKey(0)
    k1, k2, k3, k4, k5, k6 = jax.random.split(key, 6)
    mu = 0.999
    ema = EMA(mu=mu)

    # Primary: small NCHW tensor, as implied by the SinGAN module.
    shape = (2, 4, 16, 16)
    p0 = jax.random.normal(k1, shape, dtype=jnp.float32)
    x1 = jax.random.normal(k2, shape, dtype=jnp.float32)
    ema.register("param", p0)
    out = jax.block_until_ready(ema("param", x1))
    ref = (1.0 - mu) * x1 + mu * p0
    assert out.shape == shape and out.dtype == jnp.float32
    assert jnp.allclose(out, ref, atol=1e-5), "mismatch vs reference"
    assert jnp.allclose(ema.shadow["param"], ref, atol=1e-5), "shadow not updated"

    # Second step exercises the donated/aliased-shadow path again.
    x2 = jax.random.normal(k3, shape, dtype=jnp.float32)
    out2 = jax.block_until_ready(ema("param", x2))
    ref2 = (1.0 - mu) * x2 + mu * ref
    assert jnp.allclose(out2, ref2, atol=1e-5), "second step mismatch"
    assert jnp.allclose(ema.shadow["param"], ref2, atol=1e-5), "shadow not updated (2)"

    # Larger tensor (4 MiB): exercises the multi-block pipelined path (>= 2 blocks).
    big_shape = (256, 64, 8, 8)
    pb = jax.random.normal(k4, big_shape, dtype=jnp.float32)
    xb = jax.random.normal(k5, big_shape, dtype=jnp.float32)
    ema.register("big", pb)
    outb = jax.block_until_ready(ema("big", xb))
    refb = (1.0 - mu) * xb + mu * pb
    assert jnp.allclose(outb, refb, atol=1e-5), "big tensor mismatch"

    # 1-D bias and an odd, non-(8,128)-aligned 3-D shape: no padding copies needed.
    bias = jax.random.normal(k6, (37,), dtype=jnp.float32)
    ema.register("bias", bias)
    outc = jax.block_until_ready(ema("bias", jnp.ones((37,), jnp.float32)))
    refc = (1.0 - mu) * jnp.ones((37,), jnp.float32) + mu * bias
    assert jnp.allclose(outc, refc, atol=1e-5), "bias mismatch"

    odd = jnp.arange(5 * 7 * 13, dtype=jnp.float32).reshape(5, 7, 13) / 100.0
    ema.register("odd", odd)
    outd = jax.block_until_ready(ema("odd", jnp.zeros_like(odd)))
    refd = mu * odd
    assert jnp.allclose(outd, refd, atol=1e-5), "odd-shape mismatch"

    print("KERNEL_OK")
</pallas_src>

<mosaic_0001>
module attributes {stable_mosaic.version = 11 : i64} {
  func.func @_ema_kernel(%arg0: i32, %arg1: memref<2x4x16x16xf32, #tpu.memory_space<vmem>>, %arg2: memref<2x4x16x16xf32, #tpu.memory_space<vmem>>, %arg3: memref<2x4x16x16xf32, #tpu.memory_space<vmem>>) attributes {dimension_semantics = [#tpu.dimension_semantics<parallel>], iteration_bounds = array<i64: 1>, scalar_prefetch = 0 : i64, scratch_operands = 0 : i64, tpu.core_type = #tpu.core_type<tc>, window_params = [{pipeline_mode = #tpu.pipeline_mode<synchronous>, transform_indices = @transform_0, window_bounds = array<i64: 2, 4, 16, 16>}, {pipeline_mode = #tpu.pipeline_mode<synchronous>, transform_indices = @transform_1, window_bounds = array<i64: 2, 4, 16, 16>}, {pipeline_mode = #tpu.pipeline_mode<synchronous>, transform_indices = @transform_2, window_bounds = array<i64: 2, 4, 16, 16>}]} {
    %c0 = arith.constant 0 : index
    %c0_0 = arith.constant 0 : index
    %c0_1 = arith.constant 0 : index
    %c0_2 = arith.constant 0 : index
    %0 = vector.load %arg1[%c0, %c0_0, %c0_1, %c0_2] : memref<2x4x16x16xf32, #tpu.memory_space<vmem>>, vector<2x4x16x16xf32>
    %c0_3 = arith.constant 0 : index
    %c0_4 = arith.constant 0 : index
    %c0_5 = arith.constant 0 : index
    %c0_6 = arith.constant 0 : index
    %1 = vector.load %arg2[%c0_3, %c0_4, %c0_5, %c0_6] : memref<2x4x16x16xf32, #tpu.memory_space<vmem>>, vector<2x4x16x16xf32>
    %cst = arith.constant 1.000000e-03 : f32
    %2 = vector.broadcast %cst : f32 to vector<2x4x16x16xf32>
    %3 = arith.mulf %2, %0 : vector<2x4x16x16xf32>
    %cst_7 = arith.constant 9.990000e-01 : f32
    %4 = vector.broadcast %cst_7 : f32 to vector<2x4x16x16xf32>
    %5 = arith.mulf %4, %1 : vector<2x4x16x16xf32>
    %6 = arith.addf %3, %5 : vector<2x4x16x16xf32>
    %c0_8 = arith.constant 0 : index
    %c0_9 = arith.constant 0 : index
    %c0_10 = arith.constant 0 : index
    %c0_11 = arith.constant 0 : index
    %7 = vector.load %arg3[%c0_8, %c0_9, %c0_10, %c0_11] : memref<2x4x16x16xf32, #tpu.memory_space<vmem>>, vector<2x4x16x16xf32>
    tpu.vector_store %arg3[%c0_8, %c0_9, %c0_10, %c0_11], %6 {strides = array<i32>} : memref<2x4x16x16xf32, #tpu.memory_space<vmem>>, vector<2x4x16x16xf32>,
    return
  }
  func.func @transform_0(%arg0: i32) -> (i32, i32, i32, i32) {
    %c0_i32 = arith.constant 0 : i32
    %c0_i32_0 = arith.constant 0 : i32
    %c0_i32_1 = arith.constant 0 : i32
    %c0_i32_2 = arith.constant 0 : i32
    %c0_i32_3 = arith.constant 0 : i32
    return %c0_i32, %c0_i32_0, %c0_i32_1, %c0_i32_2 : i32, i32, i32, i32
  }
  func.func @transform_1(%arg0: i32) -> (i32, i32, i32, i32) {
    %c0_i32 = arith.constant 0 : i32
    %c0_i32_0 = arith.constant 0 : i32
    %c0_i32_1 = arith.constant 0 : i32
    %c0_i32_2 = arith.constant 0 : i32
    %c0_i32_3 = arith.constant 0 : i32
    return %c0_i32, %c0_i32_0, %c0_i32_1, %c0_i32_2 : i32, i32, i32, i32
  }
  func.func @transform_2(%arg0: i32) -> (i32, i32, i32, i32) {
    %c0_i32 = arith.constant 0 : i32
    %c0_i32_0 = arith.constant 0 : i32
    %c0_i32_1 = arith.constant 0 : i32
    %c0_i32_2 = arith.constant 0 : i32
    %c0_i32_3 = arith.constant 0 : i32
    return %c0_i32, %c0_i32_0, %c0_i32_1, %c0_i32_2 : i32, i32, i32, i32
  }
}

</mosaic_0001>

<llo_original>
// kernel: ema_update.1
$region0: #{ema_update.1}
  #allocation0 [shape = 'u32[]', space=smem, size = 0x4, offset = 0x4, fixed_abs, tag = 'smem constant byte address 0x4 - core index']
  #allocation1 [shape = 'u32[144,128]{1,0:T(1,128)}', space=vmem, size = 0x12000, scoped, tag = 'internal scratch']
  %s0 = inlined_call_operand.hbm [shape: f32[2,4,16,16], index: 0, kind: input, shape index: {}]
  %s1 = inlined_call_operand.hbm [shape: f32[2,4,16,16], index: 1, kind: input, shape index: {}, may-alias: {1,2}]
  %s2 = inlined_call_operand.hbm [shape: f32[2,4,16,16], index: 2, kind: output, shape index: {}, may-alias: {1,2}]
  %s3 = sld [smem:[#allocation0]]
  $region26: #{ema_update.1} parent=0
    _
  %s5 = ssub.s32 1, %s3
  %s6 = scalar_select 0, %s5, %s3
  $region1: #{ema_update.1} parent=0
    #allocation2 [shape = 'u8[65536]{0}', space=vmem, size = 0x10000, scoped, tag = 'input window, operand 0, single buffered']
    #allocation3 [shape = 's32[1]{0}', space=sflag, size = 0x4, scoped, tag = 'scoped memory for ema_update.1']
    #allocation4 [shape = 's32[1]{0}', space=sflag, size = 0x4, scoped, tag = 'scoped memory for ema_update.1']
    #allocation5 [shape = 'u8[65536]{0}', space=vmem, size = 0x10000, scoped, tag = 'input window, operand 1, single buffered']
    #allocation6 [shape = 's32[1]{0}', space=sflag, size = 0x4, scoped, tag = 'scoped memory for ema_update.1']
    #allocation7 [shape = 'u8[65536]{0}', space=vmem, size = 0x10000, scoped, tag = 'output window, operand 0, single buffered']
    %7 = vsyncpa [#allocation3], 0
    %8 = vsyncpa [#allocation6], 0
    %9 = vsyncpa [#allocation4], 0
    // Predicated region
    $region2: #{ema_update.1} parent=1 // pred_check
      _
    $region3: #{ema_update.1} parent=1 // pred_check_branch
      %11 = sbr.rel (0) target = $region5
    $region4: #{ema_update.1} parent=1 // pred_region
      %s13 = ssub.s32 2048, 2048
      %14 = vsyncadd [#allocation3], %s13
      %s15 = sshll.u32 [#allocation2], 4
      %s16 = int_to_ptr.vmem [resolvable:$true] %s15
      %21 = dma.hbm_to_vmem [thread:$0]  %s0, 2048, %s16, [#allocation3], 128, 128, 8
    $region5: #{ema_update.1} parent=1 // pred_fallthru
      _
    // Predicated region
    $region6: #{ema_update.1} parent=1 // pred_check
      _
    $region7: #{ema_update.1} parent=1 // pred_check_branch
      %23 = sbr.rel (0) target = $region9
    $region8: #{ema_update.1} parent=1 // pred_region
      %s25 = ssub.s32 2048, 2048
      %26 = vsyncadd [#allocation6], %s25
      %s27 = sshll.u32 [#allocation5], 4
      %s28 = int_to_ptr.vmem [resolvable:$true] %s27
      %33 = dma.hbm_to_vmem [thread:$0]  %s1, 2048, %s28, [#allocation6], 128, 128, 8
    $region9: #{ema_update.1} parent=1 // pred_fallthru
      _
    // Predicated region
    $region10: #{ema_update.1} parent=1 // pred_check
      _
    $region11: #{ema_update.1} parent=1 // pred_check_branch
      %35 = sbr.rel (0) target = $region13
    $region12: #{ema_update.1} parent=1 // pred_region
      %36 = dma.done [#allocation3], 2048
    $region13: #{ema_update.1} parent=1 // pred_fallthru
      _
    // Predicated region
    $region14: #{ema_update.1} parent=1 // pred_check
      _
    $region15: #{ema_update.1} parent=1 // pred_check_branch
      %38 = sbr.rel (0) target = $region17
    $region16: #{ema_update.1} parent=1 // pred_region
      %39 = dma.done [#allocation6], 2048
    $region17: #{ema_update.1} parent=1 // pred_fallthru
      _
    %v40 = vld [vmem:[#allocation2] sm:$0xff]
    %v41 = vld [vmem:[#allocation2 + $0x8] sm:$0xff]
    %v42 = vld [vmem:[#allocation2 + $0x10] sm:$0xff]
    %v43 = vld [vmem:[#allocation2 + $0x18] sm:$0xff]
    %v44 = vld [vmem:[#allocation2 + $0x20] sm:$0xff]
    %v45 = vld [vmem:[#allocation2 + $0x28] sm:$0xff]
    %v46 = vld [vmem:[#allocation2 + $0x30] sm:$0xff]
    %v47 = vld [vmem:[#allocation2 + $0x38] sm:$0xff]
    %v48 = vld [vmem:[#allocation2 + $0x40] sm:$0xff]
    %v49 = vld [vmem:[#allocation2 + $0x48] sm:$0xff]
    %v50 = vld [vmem:[#allocation2 + $0x50] sm:$0xff]
    %v51 = vld [vmem:[#allocation2 + $0x58] sm:$0xff]
    %v52 = vld [vmem:[#allocation2 + $0x60] sm:$0xff]
    %v53 = vld [vmem:[#allocation2 + $0x68] sm:$0xff]
    %v54 = vld [vmem:[#allocation2 + $0x70] sm:$0xff]
    %v55 = vld [vmem:[#allocation2 + $0x78] sm:$0xff]
    %v56 = vld [vmem:[#allocation5] sm:$0xff]
    %v57 = vld [vmem:[#allocation5 + $0x8] sm:$0xff]
    %v58 = vld [vmem:[#allocation5 + $0x10] sm:$0xff]
    %v59 = vld [vmem:[#allocation5 + $0x18] sm:$0xff]
    %v60 = vld [vmem:[#allocation5 + $0x20] sm:$0xff]
    %v61 = vld [vmem:[#allocation5 + $0x28] sm:$0xff]
    %v62 = vld [vmem:[#allocation5 + $0x30] sm:$0xff]
    %v63 = vld [vmem:[#allocation5 + $0x38] sm:$0xff]
    %v64 = vld [vmem:[#allocation5 + $0x40] sm:$0xff]
    %v65 = vld [vmem:[#allocation5 + $0x48] sm:$0xff]
    %v66 = vld [vmem:[#allocation5 + $0x50] sm:$0xff]
    %v67 = vld [vmem:[#allocation5 + $0x58] sm:$0xff]
    %v68 = vld [vmem:[#allocation5 + $0x60] sm:$0xff]
    %v69 = vld [vmem:[#allocation5 + $0x68] sm:$0xff]
    %v70 = vld [vmem:[#allocation5 + $0x70] sm:$0xff]
    %v71 = vld [vmem:[#allocation5 + $0x78] sm:$0xff]
    %v72 = vmul.f32 %v40, 0.001
    %v73 = vmul.f32 %v41, 0.001
    %v74 = vmul.f32 %v42, 0.001
    %v75 = vmul.f32 %v43, 0.001
    %v76 = vmul.f32 %v44, 0.001
    %v77 = vmul.f32 %v45, 0.001
    %v78 = vmul.f32 %v46, 0.001
    %v79 = vmul.f32 %v47, 0.001
    %v80 = vmul.f32 %v48, 0.001
    %v81 = vmul.f32 %v49, 0.001
    %v82 = vmul.f32 %v50, 0.001
    %v83 = vmul.f32 %v51, 0.001
    %v84 = vmul.f32 %v52, 0.001
    %v85 = vmul.f32 %v53, 0.001
    %v86 = vmul.f32 %v54, 0.001
    %v87 = vmul.f32 %v55, 0.001
    %v88 = vmul.f32 %v56, 0.999
    %v89 = vmul.f32 %v57, 0.999
    %v90 = vmul.f32 %v58, 0.999
    %v91 = vmul.f32 %v59, 0.999
    %v92 = vmul.f32 %v60, 0.999
    %v93 = vmul.f32 %v61, 0.999
    %v94 = vmul.f32 %v62, 0.999
    %v95 = vmul.f32 %v63, 0.999
    %v96 = vmul.f32 %v64, 0.999
    %v97 = vmul.f32 %v65, 0.999
    %v98 = vmul.f32 %v66, 0.999
    %v99 = vmul.f32 %v67, 0.999
    %v100 = vmul.f32 %v68, 0.999
    %v101 = vmul.f32 %v69, 0.999
    %v102 = vmul.f32 %v70, 0.999
    %v103 = vmul.f32 %v71, 0.999
    %v104 = vadd.f32 %v72, %v88
    %v105 = vadd.f32 %v73, %v89
    %v106 = vadd.f32 %v74, %v90
    %v107 = vadd.f32 %v75, %v91
    %v108 = vadd.f32 %v76, %v92
    %v109 = vadd.f32 %v77, %v93
    %v110 = vadd.f32 %v78, %v94
    %v111 = vadd.f32 %v79, %v95
    %v112 = vadd.f32 %v80, %v96
    %v113 = vadd.f32 %v81, %v97
    %v114 = vadd.f32 %v82, %v98
    %v115 = vadd.f32 %v83, %v99
    %v116 = vadd.f32 %v84, %v100
    %v117 = vadd.f32 %v85, %v101
    %v118 = vadd.f32 %v86, %v102
    %v119 = vadd.f32 %v87, %v103
    %vm120 = vcmask 130048
    %121 = vst.msk [vmem:[#allocation7] sm:$0xff] %vm120, %v104
    %122 = vst.msk [vmem:[#allocation7 + $0x8] sm:$0xff] %vm120, %v105
    %123 = vst.msk [vmem:[#allocation7 + $0x10] sm:$0xff] %vm120, %v106
    %124 = vst.msk [vmem:[#allocation7 + $0x18] sm:$0xff] %vm120, %v107
    %125 = vst.msk [vmem:[#allocation7 + $0x20] sm:$0xff] %vm120, %v108
    %126 = vst.msk [vmem:[#allocation7 + $0x28] sm:$0xff] %vm120, %v109
    %127 = vst.msk [vmem:[#allocation7 + $0x30] sm:$0xff] %vm120, %v110
    %128 = vst.msk [vmem:[#allocation7 + $0x38] sm:$0xff] %vm120, %v111
    %129 = vst.msk [vmem:[#allocation7 + $0x40] sm:$0xff] %vm120, %v112
    %130 = vst.msk [vmem:[#allocation7 + $0x48] sm:$0xff] %vm120, %v113
    %131 = vst.msk [vmem:[#allocation7 + $0x50] sm:$0xff] %vm120, %v114
    %132 = vst.msk [vmem:[#allocation7 + $0x58] sm:$0xff] %vm120, %v115
    %133 = vst.msk [vmem:[#allocation7 + $0x60] sm:$0xff] %vm120, %v116
    %134 = vst.msk [vmem:[#allocation7 + $0x68] sm:$0xff] %vm120, %v117
    %135 = vst.msk [vmem:[#allocation7 + $0x70] sm:$0xff] %vm120, %v118
    %136 = vst.msk [vmem:[#allocation7 + $0x78] sm:$0xff] %vm120, %v119
    // Predicated region
    $region18: #{ema_update.1} parent=1 // pred_check
      _
    $region19: #{ema_update.1} parent=1 // pred_check_branch
      %138 = sbr.rel (0) target = $region21
    $region20: #{ema_update.1} parent=1 // pred_region
      %s140 = ssub.s32 2048, 2048
      %141 = vsyncadd [#allocation4], %s140
      %s142 = sshll.u32 [#allocation7], 4
      %s143 = int_to_ptr.vmem [resolvable:$true] %s142
      %148 = dma.vmem_to_hbm [thread:$0]  %s143, 2048, %s2, [#allocation4], 128, 128, 8
    $region21: #{ema_update.1} parent=1 // pred_fallthru
      _
    // Predicated region
    $region22: #{ema_update.1} parent=1 // pred_check
      _
    $region23: #{ema_update.1} parent=1 // pred_check_branch
      %150 = sbr.rel (0) target = $region25
    $region24: #{ema_update.1} parent=1 // pred_region
      %151 = dma.done [#allocation4], 2048
    $region25: #{ema_update.1} parent=1 // pred_fallthru
      _
    %152 = vsyncpa [#allocation3], 1
    %153 = vsyncpa [#allocation6], 1
    %154 = vsyncpa [#allocation4], 1

</llo_original>
